<compile_context>
chip_gen: v7x
topology: tpu7x:2x2x1
jax: 0.10.0
libtpu: 0.0.40
codegen_flags: <defaults>
</compile_context>

<pallas_src>
import functools

import jax
import jax.numpy as jnp
from jax.experimental import pallas as pl
from jax.experimental.pallas import tpu as pltpu

_LANES = 128


def _sigma_variance_kernel(sigma_ref, out_ref, *, epsilon: float):
    # Whole (1, Npad) slab is the block; cast on load so compute is f32 even
    # if the stored parameter is bf16.
    x = sigma_ref[...].astype(jnp.float32)
    # Numerically stable softplus: max(x, 0) + log1p(exp(-|x|))
    sp = jnp.maximum(x, 0.0) + jnp.log1p(jnp.exp(-jnp.abs(x)))
    out_ref[...] = sp + jnp.float32(epsilon)


def _sigma_variance_pallas(sigma: jax.Array, epsilon: float) -> jax.Array:
    """Forward impl. sigma: any shape (typically (1,) or (N,)); returns same shape, f32."""
    orig_shape = sigma.shape
    flat = sigma.reshape(-1)
    n = flat.shape[0]
    n_pad = max(_LANES, ((n + _LANES - 1) // _LANES) * _LANES)

    # Lane-dense (1, n_pad) slab; pad region is zeros (ignored after slice).
    slab = jnp.zeros((1, n_pad), jnp.float32).at[0, :n].set(flat.astype(jnp.float32))

    out = pl.pallas_call(
        functools.partial(_sigma_variance_kernel, epsilon=epsilon),
        out_shape=jax.ShapeDtypeStruct((1, n_pad), jnp.float32),
        in_specs=[pl.BlockSpec(memory_space=pltpu.MemorySpace.VMEM)],
        out_specs=pl.BlockSpec(memory_space=pltpu.MemorySpace.VMEM),
        cost_estimate=pl.CostEstimate(
            flops=4 * n_pad,
            transcendentals=2 * n_pad,
            bytes_accessed=8 * n_pad,
        ),
    )(slab)

    return out[0, :n].reshape(orig_shape)


# --- autodiff: pallas_call has no AD rule; provide analytic VJP -------------
@functools.partial(jax.custom_vjp, nondiff_argnums=(1,))
def sigma_variance(sigma: jax.Array, epsilon: float = 1e-3) -> jax.Array:
    """softplus(sigma) + epsilon, computed with a Pallas TPU kernel."""
    return _sigma_variance_pallas(sigma, epsilon)


def _sigma_variance_fwd(sigma, epsilon):
    return _sigma_variance_pallas(sigma, epsilon), sigma


def _sigma_variance_bwd(epsilon, sigma, g):
    # d/dsigma [softplus(sigma) + eps] = sigmoid(sigma)
    grad = g * jax.nn.sigmoid(sigma.astype(jnp.float32)).astype(g.dtype)
    return (grad.astype(sigma.dtype),)


sigma_variance.defvjp(_sigma_variance_fwd, _sigma_variance_bwd)


if __name__ == "__main__":
    key = jax.random.PRNGKey(0)
    # Deterministic analogue of torch.rand(1): uniform in [0, 1).
    sigma = jax.random.uniform(key, (1,), dtype=jnp.float32)
    epsilon = 1e-3

    result = sigma_variance(sigma, epsilon)
    jax.block_until_ready(result)

    # Forward check against pure-JAX reference.
    ref = jax.nn.softplus(sigma) + epsilon
    assert jnp.allclose(result, ref, atol=1e-6, rtol=1e-6), (result, ref)

    # Gradient check (learnable parameter): custom_vjp -> sigmoid(sigma).
    g = jax.grad(lambda s: sigma_variance(s, epsilon).sum())(sigma)
    g_ref = jax.nn.sigmoid(sigma)
    assert jnp.allclose(g, g_ref, atol=1e-6, rtol=1e-6), (g, g_ref)

    # Batched-heads path (amortized launch overhead) also matches reference.
    sigmas_n = jax.random.uniform(jax.random.PRNGKey(1), (7,), dtype=jnp.float32)
    out_n = sigma_variance(sigmas_n, epsilon)
    jax.block_until_ready(out_n)
    assert jnp.allclose(out_n, jax.nn.softplus(sigmas_n) + epsilon, atol=1e-6, rtol=1e-6)

    print("KERNEL_OK")
</pallas_src>

<mosaic_0001>
module attributes {stable_mosaic.version = 11 : i64} {
  func.func @_sigma_variance_kernel(%arg0: memref<1x128xf32, #tpu.memory_space<vmem>>, %arg1: memref<1x128xf32, #tpu.memory_space<vmem>>) attributes {dimension_semantics = [], scalar_prefetch = 0 : i64, scratch_operands = 0 : i64, tpu.core_type = #tpu.core_type<tc>} {
    %c0 = arith.constant 0 : index
    %c0_0 = arith.constant 0 : index
    %0 = vector.load %arg0[%c0, %c0_0] : memref<1x128xf32, #tpu.memory_space<vmem>>, vector<1x128xf32>
    %cst = arith.constant 0.000000e+00 : f32
    %1 = vector.broadcast %cst : f32 to vector<1x128xf32>
    %2 = arith.maximumf %0, %1 : vector<1x128xf32>
    %3 = math.absf %0 : vector<1x128xf32>
    %cst_1 = arith.constant 0.000000e+00 : f32
    %4 = vector.broadcast %cst_1 : f32 to vector<1x128xf32>
    %5 = arith.subf %4, %3 : vector<1x128xf32>
    %6 = math.exp %5 : vector<1x128xf32>
    %7 = math.log1p %6 : vector<1x128xf32>
    %8 = arith.addf %2, %7 : vector<1x128xf32>
    %cst_2 = arith.constant 1.000000e-03 : f32
    %9 = vector.broadcast %cst_2 : f32 to vector<1x128xf32>
    %10 = arith.addf %8, %9 : vector<1x128xf32>
    %c0_3 = arith.constant 0 : index
    %c0_4 = arith.constant 0 : index
    %11 = vector.load %arg1[%c0_3, %c0_4] : memref<1x128xf32, #tpu.memory_space<vmem>>, vector<1x128xf32>
    tpu.vector_store %arg1[%c0_3, %c0_4], %10 {strides = array<i32>} : memref<1x128xf32, #tpu.memory_space<vmem>>, vector<1x128xf32>,
    return
  }
}

</mosaic_0001>

<llo_original>
// kernel: tpu_custom_call.1
$region0: #{tpu_custom_call.1}
  #allocation0 [shape = 'u32[]', space=smem, size = 0x4, offset = 0x4, fixed_abs, tag = 'smem constant byte address 0x4 - core index']
  #allocation1 [shape = 'u32[144,128]{1,0:T(1,128)}', space=vmem, size = 0x12000, scoped, tag = 'internal scratch']
  %s0 = inlined_call_operand.hbm [shape: f32[1,128], index: 0, kind: input, shape index: {}]
  %s1 = inlined_call_operand.hbm [shape: f32[1,128], index: 1, kind: output, shape index: {}]
  %s2 = sld [smem:[#allocation0]]
  $region18: #{tpu_custom_call.1} parent=0
    _
  %s4 = ssub.s32 1, %s2
  %s5 = scalar_select 0, %s4, %s2
  $region1: #{tpu_custom_call.1} parent=0
    #allocation2 [shape = 'u8[512]{0}', space=vmem, size = 0x400, scoped, tag = 'input window, operand 0, single buffered']
    #allocation3 [shape = 's32[1]{0}', space=sflag, size = 0x4, scoped, tag = 'scoped memory for tpu_custom_call.1']
    #allocation4 [shape = 's32[1]{0}', space=sflag, size = 0x4, scoped, tag = 'scoped memory for tpu_custom_call.1']
    #allocation5 [shape = 'u8[512]{0}', space=vmem, size = 0x400, scoped, tag = 'output window, operand 0, single buffered']
    %6 = vsyncpa [#allocation3], 0
    %7 = vsyncpa [#allocation4], 0
    // Predicated region
    $region2: #{tpu_custom_call.1} parent=1 // pred_check
      _
    $region3: #{tpu_custom_call.1} parent=1 // pred_check_branch
      %9 = sbr.rel (0) target = $region5
    $region4: #{tpu_custom_call.1} parent=1 // pred_region
      %s11 = ssub.s32 16, 16
      %12 = vsyncadd [#allocation3], %s11
      %s14 = sshll.u32 [#allocation2], 4
      %s15 = int_to_ptr.vmem [resolvable:$true] %s14
      %17 = dma.hbm_to_vmem [thread:$0]  %s0, 16, %s15, [#allocation3]
    $region5: #{tpu_custom_call.1} parent=1 // pred_fallthru
      _
    // Predicated region
    $region6: #{tpu_custom_call.1} parent=1 // pred_check
      _
    $region7: #{tpu_custom_call.1} parent=1 // pred_check_branch
      %19 = sbr.rel (0) target = $region9
    $region8: #{tpu_custom_call.1} parent=1 // pred_region
      %20 = dma.done [#allocation3], 16
    $region9: #{tpu_custom_call.1} parent=1 // pred_fallthru
      _
    %v21 = vld [vmem:[#allocation2] sm:$0x1]
    %v22 = vmax.f32 %v21, 0.0
    %v23 = vand.u32 2147483647, %v21
    %v24 = vsub.f32 0.0, %v23
    %v25 = vmul.f32 %v24, 1.442695
    %v26 = vpow.pop %v25
    %v27 = vadd.f32 %v26, 1.0
    %v28 = vlog2.pop %v27
    %v29 = vmul.f32 %v28, 0.6931472
    %v30 = vmul.f32 -0.5, %v26
    %v31 = vadd.f32 %v30, 1.0
    %v32 = vmul.f32 %v31, %v26
    %v33 = vand.u32 2147483647, %v26
    %vm34 = vcmp.lt.f32.partialorder %v33, 0.0004427343
    %v35 = vsel %vm34, %v32, %v29
    %v36 = vadd.f32 %v22, %v35
    %v37 = vadd.f32 %v36, 0.001
    %38 = vst [vmem:[#allocation5] sm:$0x1] %v37
    // Predicated region
    $region10: #{tpu_custom_call.1} parent=1 // pred_check
      _
    $region11: #{tpu_custom_call.1} parent=1 // pred_check_branch
      %40 = sbr.rel (0) target = $region13
    $region12: #{tpu_custom_call.1} parent=1 // pred_region
      %s42 = ssub.s32 16, 16
      %43 = vsyncadd [#allocation4], %s42
      %s45 = sshll.u32 [#allocation5], 4
      %s46 = int_to_ptr.vmem [resolvable:$true] %s45
      %48 = dma.vmem_to_hbm [thread:$0]  %s46, 16, %s1, [#allocation4]
    $region13: #{tpu_custom_call.1} parent=1 // pred_fallthru
      _
    // Predicated region
    $region14: #{tpu_custom_call.1} parent=1 // pred_check
      _
    $region15: #{tpu_custom_call.1} parent=1 // pred_check_branch
      %50 = sbr.rel (0) target = $region17
    $region16: #{tpu_custom_call.1} parent=1 // pred_region
      %51 = dma.done [#allocation4], 16
    $region17: #{tpu_custom_call.1} parent=1 // pred_fallthru
      _
    %52 = vsyncpa [#allocation3], 1
    %53 = vsyncpa [#allocation4], 1

</llo_original>
